<compile_context>
chip_gen: v5e
topology: v5e:2x2
jax: 0.10.0
libtpu: 0.0.40
codegen_flags: <defaults>
</compile_context>

<pallas_src>
import functools

import jax
import jax.numpy as jnp
from jax.experimental import pallas as pl
from jax.experimental.pallas import tpu as pltpu


def _rep_rows(a, s):
    """Replicate a (B, N) block s times along rows -> (s*B, N)."""
    if s == 1:
        return a
    return jnp.concatenate([a] * s, axis=0)


# ----------------------------------------------------------------------------
# Fused kernel: MLP feature encoder + scale/shift heads + reparameterized
# gaussian draws (all S samples at once) + dictionary decode + recon/KL terms.
# Single invocation (no grid) — everything resident in VMEM at these sizes.
# ----------------------------------------------------------------------------
def _vi_encoder_kernel(x_ref, eps_ref,
                       w1, b1, w2, b2, w3, b3, w4, b4,
                       w_heads, b_heads, d_ref,
                       z_ref, rk_ref):
    f32 = jnp.float32
    x = x_ref[...]                       # (B, P)
    B = x.shape[0]
    SB, K = z_ref.shape
    S = SB // B

    # --- 4-layer ReLU MLP feature encoder (MLPEncoder) ---
    h = jnp.maximum(jnp.dot(x, w1[...], preferred_element_type=f32) + b1[...], 0.0)
    h = jnp.maximum(jnp.dot(h, w2[...], preferred_element_type=f32) + b2[...], 0.0)
    h = jnp.maximum(jnp.dot(h, w3[...], preferred_element_type=f32) + b3[...], 0.0)
    feat = jnp.dot(h, w4[...], preferred_element_type=f32) + b4[...]       # (B, P)

    # --- fused scale/shift heads: one (P, 2K) matmul, then lane-split ---
    heads = jnp.dot(feat, w_heads[...], preferred_element_type=f32) + b_heads[...]
    logscale = heads[:, :K]              # b_logscale = self.scale(feat)
    shift = heads[:, K:]                 # b_shift    = self.shift(feat)

    # --- reparameterized gaussian draw; S samples collapsed into rows ---
    shift_b = _rep_rows(shift, S)        # (S*B, K)
    logscale_b = _rep_rows(logscale, S)  # (S*B, K)
    eps = eps_ref[...]                   # (S*B, K)
    scale = jnp.exp(0.5 * logscale_b)
    z = shift_b + eps * scale            # (S*B, K)
    z_ref[...] = z

    # --- linear dictionary decode + per-sample recon / KL ---
    x_hat = jnp.dot(z, d_ref[...], preferred_element_type=f32)             # (S*B, P)
    diff = x_hat - _rep_rows(x, S)
    recon = 0.5 * jnp.sum(diff * diff, axis=-1, keepdims=True)             # (S*B, 1)
    # per-sample KL estimate: log q(z|x) - log p(z), N(shift, scale^2) vs N(0,1)
    kl = 0.5 * jnp.sum(z * z - eps * eps - logscale_b,
                       axis=-1, keepdims=True)                             # (S*B, 1)
    rk_ref[...] = jnp.concatenate([recon, kl], axis=-1)                    # (S*B, 2)


def vi_encoder_pallas(x, eps_flat, params):
    """Single fused pallas_call. Returns z (S*B, K) and packed [recon|kl] (S*B, 2)."""
    B, _ = x.shape
    SB, K = eps_flat.shape
    # Concatenate the two heads once (scale first, shift second).
    w_heads = jnp.concatenate([params["w_scale"], params["w_shift"]], axis=1)
    b_heads = jnp.concatenate([params["b_scale"], params["b_shift"]], axis=1)

    vmem = pl.BlockSpec(memory_space=pltpu.MemorySpace.VMEM)
    args = (x, eps_flat,
            params["w1"], params["b1"], params["w2"], params["b2"],
            params["w3"], params["b3"], params["w4"], params["b4"],
            w_heads, b_heads, params["dictionary"])

    z_flat, rk = pl.pallas_call(
        _vi_encoder_kernel,
        out_shape=(jax.ShapeDtypeStruct((SB, K), jnp.float32),
                   jax.ShapeDtypeStruct((SB, 2), jnp.float32)),
        in_specs=[vmem] * len(args),
        out_specs=(vmem, vmem),
        # Explicit VMEM budget; fits well under v7x's 64 MiB physical VMEM.
        # At scaled P / dict_size: cast weights to bf16 and tile over K instead.
        compiler_params=pltpu.CompilerParams(vmem_limit_bytes=64 * 1024 * 1024),
    )(*args)
    return z_flat, rk


# ----------------------------------------------------------------------------
# Parameter construction (deterministic) and full forward
# ----------------------------------------------------------------------------
def init_params(key, img_size, dict_size):
    P = img_size                      # flattened patch dimension (patch**2)
    dims = [P, 2 * P, 4 * P, 2 * P, P]
    keys = jax.random.split(key, 8)
    params = {}
    for i in range(4):
        fan_in, fan_out = dims[i], dims[i + 1]
        std = (2.0 / fan_in) ** 0.5
        params[f"w{i+1}"] = std * jax.random.normal(
            keys[i], (fan_in, fan_out), jnp.float32)
        params[f"b{i+1}"] = jnp.zeros((1, fan_out), jnp.float32)
    std = (1.0 / P) ** 0.5
    params["w_scale"] = std * jax.random.normal(keys[4], (P, dict_size), jnp.float32)
    params["b_scale"] = jnp.zeros((1, dict_size), jnp.float32)
    params["w_shift"] = std * jax.random.normal(keys[5], (P, dict_size), jnp.float32)
    params["b_shift"] = jnp.zeros((1, dict_size), jnp.float32)
    # linear dictionary decoder D: (dict_size, P)
    params["dictionary"] = (1.0 / dict_size ** 0.5) * jax.random.normal(
        keys[6], (dict_size, P), jnp.float32)
    return params


@functools.partial(jax.jit, static_argnames=("num_samples",))
def vi_encoder_forward(params, x, eps_key, num_samples=4):
    B, _ = x.shape
    K = params["w_scale"].shape[1]
    S = num_samples
    # eps row s*B + b is importance sample s of batch element b.
    # TODO(synk): could generate eps in-kernel with pltpu.prng_* to drop this
    # HBM input; negligible at these sizes.
    eps_flat = jax.random.normal(eps_key, (S * B, K), jnp.float32)

    z_flat, rk = vi_encoder_pallas(x, eps_flat, params)
    z = z_flat.reshape(S, B, K)
    recon = rk[:, 0].reshape(S, B)
    kl = rk[:, 1].reshape(S, B)

    # --- IWAE combine (tiny logsumexp over S; plain-JAX glue) ---
    log_w = -(recon + kl)                                           # (S, B)
    log_w_norm = log_w - jax.nn.logsumexp(log_w, axis=0, keepdims=True)
    weight = jnp.exp(log_w_norm)                                    # (S, B)
    iwae_loss = -jnp.mean(jax.nn.logsumexp(log_w, axis=0) - jnp.log(float(S)))
    recon_loss = jnp.mean(recon)
    kl_loss = jnp.mean(kl)
    sparse_codes = jnp.einsum("sb,sbk->bk", weight, z)              # (B, K)
    return iwae_loss, recon_loss, kl_loss, sparse_codes, weight


if __name__ == "__main__":
    IMG_SIZE = 64      # img_size = patch**2 = 8*8 (MLP branch flattened patches)
    DICT_SIZE = 32
    BATCH = 4
    NUM_SAMPLES = 4

    key = jax.random.PRNGKey(0)
    k_param, k_x, k_eps = jax.random.split(key, 3)

    params = init_params(k_param, IMG_SIZE, DICT_SIZE)
    x = jax.random.normal(k_x, (BATCH, IMG_SIZE), jnp.float32)

    out = vi_encoder_forward(params, x, k_eps, num_samples=NUM_SAMPLES)
    out = jax.block_until_ready(out)
    iwae_loss, recon_loss, kl_loss, sparse_codes, weight = out

    assert sparse_codes.shape == (BATCH, DICT_SIZE)
    assert weight.shape == (NUM_SAMPLES, BATCH)
    assert jnp.isfinite(iwae_loss) and jnp.isfinite(recon_loss) and jnp.isfinite(kl_loss)
    print("KERNEL_OK")
</pallas_src>

<mosaic_0001>
module attributes {stable_mosaic.version = 11 : i64} {
  func.func @_vi_encoder_kernel(%arg0: memref<4x64xf32, #tpu.memory_space<vmem>>, %arg1: memref<16x32xf32, #tpu.memory_space<vmem>>, %arg2: memref<64x128xf32, #tpu.memory_space<vmem>>, %arg3: memref<1x128xf32, #tpu.memory_space<vmem>>, %arg4: memref<128x256xf32, #tpu.memory_space<vmem>>, %arg5: memref<1x256xf32, #tpu.memory_space<vmem>>, %arg6: memref<256x128xf32, #tpu.memory_space<vmem>>, %arg7: memref<1x128xf32, #tpu.memory_space<vmem>>, %arg8: memref<128x64xf32, #tpu.memory_space<vmem>>, %arg9: memref<1x64xf32, #tpu.memory_space<vmem>>, %arg10: memref<64x64xf32, #tpu.memory_space<vmem>>, %arg11: memref<1x64xf32, #tpu.memory_space<vmem>>, %arg12: memref<32x64xf32, #tpu.memory_space<vmem>>, %arg13: memref<16x32xf32, #tpu.memory_space<vmem>>, %arg14: memref<16x2xf32, #tpu.memory_space<vmem>>) attributes {dimension_semantics = [], scalar_prefetch = 0 : i64, scratch_operands = 0 : i64, tpu.core_type = #tpu.core_type<tc>} {
    %c0 = arith.constant 0 : index
    %c0_0 = arith.constant 0 : index
    %0 = vector.load %arg0[%c0, %c0_0] : memref<4x64xf32, #tpu.memory_space<vmem>>, vector<4x64xf32>
    %c0_1 = arith.constant 0 : index
    %c0_2 = arith.constant 0 : index
    %1 = vector.load %arg2[%c0_1, %c0_2] : memref<64x128xf32, #tpu.memory_space<vmem>>, vector<64x128xf32>
    %cst = arith.constant dense<0.000000e+00> : vector<4x128xf32>
    %2 = tpu.matmul %0, %1, %cst {dimension_numbers = #tpu.dot_dimension_numbers<[1], [0], [0], [1], [0, 0, 1, 1], [], []>} : vector<4x64xf32>, vector<64x128xf32>, vector<4x128xf32> -> vector<4x128xf32>
    %c0_3 = arith.constant 0 : index
    %c0_4 = arith.constant 0 : index
    %3 = vector.load %arg3[%c0_3, %c0_4] : memref<1x128xf32, #tpu.memory_space<vmem>>, vector<1x128xf32>
    %4 = vector.broadcast %3 : vector<1x128xf32> to vector<4x128xf32>
    %5 = arith.addf %2, %4 : vector<4x128xf32>
    %cst_5 = arith.constant 0.000000e+00 : f32
    %6 = vector.broadcast %cst_5 : f32 to vector<4x128xf32>
    %7 = arith.maximumf %5, %6 : vector<4x128xf32>
    %c0_6 = arith.constant 0 : index
    %c0_7 = arith.constant 0 : index
    %8 = vector.load %arg4[%c0_6, %c0_7] : memref<128x256xf32, #tpu.memory_space<vmem>>, vector<128x256xf32>
    %cst_8 = arith.constant dense<0.000000e+00> : vector<4x256xf32>
    %9 = tpu.matmul %7, %8, %cst_8 {dimension_numbers = #tpu.dot_dimension_numbers<[1], [0], [0], [1], [0, 0, 1, 1], [], []>} : vector<4x128xf32>, vector<128x256xf32>, vector<4x256xf32> -> vector<4x256xf32>
    %c0_9 = arith.constant 0 : index
    %c0_10 = arith.constant 0 : index
    %10 = vector.load %arg5[%c0_9, %c0_10] : memref<1x256xf32, #tpu.memory_space<vmem>>, vector<1x256xf32>
    %11 = vector.broadcast %10 : vector<1x256xf32> to vector<4x256xf32>
    %12 = arith.addf %9, %11 : vector<4x256xf32>
    %cst_11 = arith.constant 0.000000e+00 : f32
    %13 = vector.broadcast %cst_11 : f32 to vector<4x256xf32>
    %14 = arith.maximumf %12, %13 : vector<4x256xf32>
    %c0_12 = arith.constant 0 : index
    %c0_13 = arith.constant 0 : index
    %15 = vector.load %arg6[%c0_12, %c0_13] : memref<256x128xf32, #tpu.memory_space<vmem>>, vector<256x128xf32>
    %cst_14 = arith.constant dense<0.000000e+00> : vector<4x128xf32>
    %16 = tpu.matmul %14, %15, %cst_14 {dimension_numbers = #tpu.dot_dimension_numbers<[1], [0], [0], [1], [0, 0, 1, 1], [], []>} : vector<4x256xf32>, vector<256x128xf32>, vector<4x128xf32> -> vector<4x128xf32>
    %c0_15 = arith.constant 0 : index
    %c0_16 = arith.constant 0 : index
    %17 = vector.load %arg7[%c0_15, %c0_16] : memref<1x128xf32, #tpu.memory_space<vmem>>, vector<1x128xf32>
    %18 = vector.broadcast %17 : vector<1x128xf32> to vector<4x128xf32>
    %19 = arith.addf %16, %18 : vector<4x128xf32>
    %cst_17 = arith.constant 0.000000e+00 : f32
    %20 = vector.broadcast %cst_17 : f32 to vector<4x128xf32>
    %21 = arith.maximumf %19, %20 : vector<4x128xf32>
    %c0_18 = arith.constant 0 : index
    %c0_19 = arith.constant 0 : index
    %22 = vector.load %arg8[%c0_18, %c0_19] : memref<128x64xf32, #tpu.memory_space<vmem>>, vector<128x64xf32>
    %cst_20 = arith.constant dense<0.000000e+00> : vector<4x64xf32>
    %23 = tpu.matmul %21, %22, %cst_20 {dimension_numbers = #tpu.dot_dimension_numbers<[1], [0], [0], [1], [0, 0, 1, 1], [], []>} : vector<4x128xf32>, vector<128x64xf32>, vector<4x64xf32> -> vector<4x64xf32>
    %c0_21 = arith.constant 0 : index
    %c0_22 = arith.constant 0 : index
    %24 = vector.load %arg9[%c0_21, %c0_22] : memref<1x64xf32, #tpu.memory_space<vmem>>, vector<1x64xf32>
    %25 = vector.broadcast %24 : vector<1x64xf32> to vector<4x64xf32>
    %26 = arith.addf %23, %25 : vector<4x64xf32>
    %c0_23 = arith.constant 0 : index
    %c0_24 = arith.constant 0 : index
    %27 = vector.load %arg10[%c0_23, %c0_24] : memref<64x64xf32, #tpu.memory_space<vmem>>, vector<64x64xf32>
    %cst_25 = arith.constant dense<0.000000e+00> : vector<4x64xf32>
    %28 = tpu.matmul %26, %27, %cst_25 {dimension_numbers = #tpu.dot_dimension_numbers<[1], [0], [0], [1], [0, 0, 1, 1], [], []>} : vector<4x64xf32>, vector<64x64xf32>, vector<4x64xf32> -> vector<4x64xf32>
    %c0_26 = arith.constant 0 : index
    %c0_27 = arith.constant 0 : index
    %29 = vector.load %arg11[%c0_26, %c0_27] : memref<1x64xf32, #tpu.memory_space<vmem>>, vector<1x64xf32>
    %30 = vector.broadcast %29 : vector<1x64xf32> to vector<4x64xf32>
    %31 = arith.addf %28, %30 : vector<4x64xf32>
    %32 = vector.extract_strided_slice %31 {offsets = [0, 0], sizes = [4, 32], strides = [1, 1]} : vector<4x64xf32> to vector<4x32xf32>
    %33 = vector.extract_strided_slice %31 {offsets = [0, 32], sizes = [4, 32], strides = [1, 1]} : vector<4x64xf32> to vector<4x32xf32>
    %34 = tpu.concatenate %33, %33, %33, %33 in 0 : vector<4x32xf32>, vector<4x32xf32>, vector<4x32xf32>, vector<4x32xf32> -> vector<16x32xf32>
    %35 = tpu.concatenate %32, %32, %32, %32 in 0 : vector<4x32xf32>, vector<4x32xf32>, vector<4x32xf32>, vector<4x32xf32> -> vector<16x32xf32>
    %c0_28 = arith.constant 0 : index
    %c0_29 = arith.constant 0 : index
    %36 = vector.load %arg1[%c0_28, %c0_29] : memref<16x32xf32, #tpu.memory_space<vmem>>, vector<16x32xf32>
    %cst_30 = arith.constant 5.000000e-01 : f32
    %37 = vector.broadcast %cst_30 : f32 to vector<16x32xf32>
    %38 = arith.mulf %37, %35 : vector<16x32xf32>
    %39 = math.exp %38 : vector<16x32xf32>
    %40 = arith.mulf %36, %39 : vector<16x32xf32>
    %41 = arith.addf %34, %40 : vector<16x32xf32>
    %c0_31 = arith.constant 0 : index
    %c0_32 = arith.constant 0 : index
    %42 = vector.load %arg13[%c0_31, %c0_32] : memref<16x32xf32, #tpu.memory_space<vmem>>, vector<16x32xf32>
    tpu.vector_store %arg13[%c0_31, %c0_32], %41 {strides = array<i32>} : memref<16x32xf32, #tpu.memory_space<vmem>>, vector<16x32xf32>,
    %c0_33 = arith.constant 0 : index
    %c0_34 = arith.constant 0 : index
    %43 = vector.load %arg12[%c0_33, %c0_34] : memref<32x64xf32, #tpu.memory_space<vmem>>, vector<32x64xf32>
    %cst_35 = arith.constant dense<0.000000e+00> : vector<16x64xf32>
    %44 = tpu.matmul %41, %43, %cst_35 {dimension_numbers = #tpu.dot_dimension_numbers<[1], [0], [0], [1], [0, 0, 1, 1], [], []>} : vector<16x32xf32>, vector<32x64xf32>, vector<16x64xf32> -> vector<16x64xf32>
    %45 = tpu.concatenate %0, %0, %0, %0 in 0 : vector<4x64xf32>, vector<4x64xf32>, vector<4x64xf32>, vector<4x64xf32> -> vector<16x64xf32>
    %46 = arith.subf %44, %45 : vector<16x64xf32>
    %47 = arith.mulf %46, %46 : vector<16x64xf32>
    %cst_36 = arith.constant dense<0.000000e+00> : vector<16xf32>
    %48 = vector.multi_reduction <add>, %47, %cst_36 [1] : vector<16x64xf32> to vector<16xf32>
    %49 = vector.shape_cast %48 : vector<16xf32> to vector<16x1xf32>
    %cst_37 = arith.constant 5.000000e-01 : f32
    %50 = vector.broadcast %cst_37 : f32 to vector<16x1xf32>
    %51 = arith.mulf %50, %49 : vector<16x1xf32>
    %52 = arith.mulf %41, %41 : vector<16x32xf32>
    %53 = arith.mulf %36, %36 : vector<16x32xf32>
    %54 = arith.subf %52, %53 : vector<16x32xf32>
    %55 = arith.subf %54, %35 : vector<16x32xf32>
    %cst_38 = arith.constant dense<0.000000e+00> : vector<16xf32>
    %56 = vector.multi_reduction <add>, %55, %cst_38 [1] : vector<16x32xf32> to vector<16xf32>
    %57 = vector.shape_cast %56 : vector<16xf32> to vector<16x1xf32>
    %cst_39 = arith.constant 5.000000e-01 : f32
    %58 = vector.broadcast %cst_39 : f32 to vector<16x1xf32>
    %59 = arith.mulf %58, %57 : vector<16x1xf32>
    %60 = tpu.concatenate %51, %59 in 1 : vector<16x1xf32>, vector<16x1xf32> -> vector<16x2xf32>
    %c0_40 = arith.constant 0 : index
    %c0_41 = arith.constant 0 : index
    %61 = vector.load %arg14[%c0_40, %c0_41] : memref<16x2xf32, #tpu.memory_space<vmem>>, vector<16x2xf32>
    tpu.vector_store %arg14[%c0_40, %c0_41], %60 {strides = array<i32>} : memref<16x2xf32, #tpu.memory_space<vmem>>, vector<16x2xf32>,
    return
  }
}

</mosaic_0001>

<llo_original>
// kernel: vi_encoder_forward.1
$region0: #{vi_encoder_forward.1}
  #allocation0 [shape = 'u32[]', space=smem, size = 0x4, offset = 0x4, fixed_abs, tag = 'smem constant byte address 0x4 - core index']
  #allocation1 [shape = 'u32[72,128]{1,0:T(1,128)}', space=vmem, size = 0x9000, scoped, tag = 'internal scratch']
  %s0 = inlined_call_operand.vmem [shape: f32[4,64], index: 0, kind: input, shape index: {}]
  %s1 = inlined_call_operand.vmem [shape: f32[16,32], index: 1, kind: input, shape index: {}]
  %s2 = inlined_call_operand.vmem [shape: f32[64,128], index: 2, kind: input, shape index: {}]
  %s3 = inlined_call_operand.vmem [shape: f32[1,128], index: 3, kind: input, shape index: {}]
  %s4 = inlined_call_operand.vmem [shape: f32[128,256], index: 4, kind: input, shape index: {}]
  %s5 = inlined_call_operand.vmem [shape: f32[1,256], index: 5, kind: input, shape index: {}]
  %s6 = inlined_call_operand.hbm [shape: f32[256,128], index: 6, kind: input, shape index: {}]
  %s7 = inlined_call_operand.vmem [shape: f32[1,128], index: 7, kind: input, shape index: {}]
  %s8 = inlined_call_operand.vmem [shape: f32[128,64], index: 8, kind: input, shape index: {}]
  %s9 = inlined_call_operand.vmem [shape: f32[1,64], index: 9, kind: input, shape index: {}]
  %s10 = inlined_call_operand.vmem [shape: f32[64,64], index: 10, kind: input, shape index: {}]
  %s11 = inlined_call_operand.vmem [shape: f32[1,64], index: 11, kind: input, shape index: {}]
  %s12 = inlined_call_operand.vmem [shape: f32[32,64], index: 12, kind: input, shape index: {}]
  %s13 = inlined_call_operand.vmem [shape: f32[16,32], index: 13, kind: output, shape index: {0}]
  %s14 = inlined_call_operand.vmem [shape: f32[16,2], index: 14, kind: output, shape index: {1}]
  %15 = xla_tuple %s13, %s14
  %s16 = sld [smem:[#allocation0]]
  $region74: #{vi_encoder_forward.1} parent=0
    _
  %s18 = ssub.s32 1, %s16
  %s19 = scalar_select 0, %s18, %s16
  $region1: #{vi_encoder_forward.1} parent=0
    #allocation2 [shape = 'u8[131072]{0}', space=vmem, size = 0x20000, scoped, tag = 'input window, operand 6, single buffered']
    #allocation3 [shape = 's32[1]{0}', space=sflag, size = 0x4, scoped, tag = 'scoped memory for vi_encoder_forward.1']
    %20 = vsyncpa [#allocation3], 0
    // Predicated region
    $region2: #{vi_encoder_forward.1} parent=1 // pred_check
      _
    $region3: #{vi_encoder_forward.1} parent=1 // pred_check_branch
      %22 = sbr.rel (0) target = $region5
    $region4: #{vi_encoder_forward.1} parent=1 // pred_region
      _
    $region5: #{vi_encoder_forward.1} parent=1 // pred_fallthru
      _
    // Predicated region
    $region6: #{vi_encoder_forward.1} parent=1 // pred_check
      _
    $region7: #{vi_encoder_forward.1} parent=1 // pred_check_branch
      %24 = sbr.rel (0) target = $region9
    $region8: #{vi_encoder_forward.1} parent=1 // pred_region
      _
    $region9: #{vi_encoder_forward.1} parent=1 // pred_fallthru
      _
    // Predicated region
    $region10: #{vi_encoder_forward.1} parent=1 // pred_check
      _
    $region11: #{vi_encoder_forward.1} parent=1 // pred_check_branch
      %26 = sbr.rel (0) target = $region13
    $region12: #{vi_encoder_forward.1} parent=1 // pred_region
      _
    $region13: #{vi_encoder_forward.1} parent=1 // pred_fallthru
      _
    // Predicated region
    $region14: #{vi_encoder_forward.1} parent=1 // pred_check
      _
    $region15: #{vi_encoder_forward.1} parent=1 // pred_check_branch
      %28 = sbr.rel (0) target = $region17
    $region16: #{vi_encoder_forward.1} parent=1 // pred_region
      _
    $region17: #{vi_encoder_forward.1} parent=1 // pred_fallthru
      _
    // Predicated region
    $region18: #{vi_encoder_forward.1} parent=1 // pred_check
      _
    $region19: #{vi_encoder_forward.1} parent=1 // pred_check_branch
      %30 = sbr.rel (0) target = $region21
    $region20: #{vi_encoder_forward.1} parent=1 // pred_region
      _
    $region21: #{vi_encoder_forward.1} parent=1 // pred_fallthru
      _
    // Predicated region
    $region22: #{vi_encoder_forward.1} parent=1 // pred_check
      _
    $region23: #{vi_encoder_forward.1} parent=1 // pred_check_branch
      %32 = sbr.rel (0) target = $region25
    $region24: #{vi_encoder_forward.1} parent=1 // pred_region
      _
    $region25: #{vi_encoder_forward.1} parent=1 // pred_fallthru
      _
    // Predicated region
    $region26: #{vi_encoder_forward.1} parent=1 // pred_check
      _
    $region27: #{vi_encoder_forward.1} parent=1 // pred_check_branch
      %34 = sbr.rel (0) target = $region29
    $region28: #{vi_encoder_forward.1} parent=1 // pred_region
      %36 = vsyncadd [#allocation3], 0
      %s37 = sshll.u32 %s6, 4
      %s38 = int_to_ptr.hbm [resolvable:$true] %s37
      %s39 = sshll.u32 [#allocation2], 4
      %s40 = int_to_ptr.vmem [resolvable:$true] %s39
      %45 = dma.hbm_to_vmem [thread:$0]  %s38, 4096, %s40, [#allocation3], 128, 128, 8
    $region29: #{vi_encoder_forward.1} parent=1 // pred_fallthru
      _
    // Predicated region
    $region30: #{vi_encoder_forward.1} parent=1 // pred_check
      _
    $region31: #{vi_encoder_forward.1} parent=1 // pred_check_branch
      %47 = sbr.rel (0) target = $region33
    $region32: #{vi_encoder_forward.1} parent=1 // pred_region
      _
    $region33: #{vi_encoder_forward.1} parent=1 // pred_fallthru
      _
    // Predicated region
    $region34: #{vi_encoder_forward.1} parent=1 // pred_check
      _
    $region35: #{vi_encoder_forward.1} parent=1 // pred_check_branch
      %49 = sbr.rel (0) target = $region37
    $region36: #{vi_encoder_forward.1} parent=1 // pred_region
      _
    $region37: #{vi_encoder_forward.1} parent=1 // pred_fallthru
      _
    // Predicated region
    $region38: #{vi_encoder_forward.1} parent=1 // pred_check
      _
    $region39: #{vi_encoder_forward.1} parent=1 // pred_check_branch
      %51 = sbr.rel (0) target = $region41
    $region40: #{vi_encoder_forward.1} parent=1 // pred_region
      _
    $region41: #{vi_encoder_forward.1} parent=1 // pred_fallthru
      _
    // Predicated region
    $region42: #{vi_encoder_forward.1} parent=1 // pred_check
      _
    $region43: #{vi_encoder_forward.1} parent=1 // pred_check_branch
      %53 = sbr.rel (0) target = $region45
    $region44: #{vi_encoder_forward.1} parent=1 // pred_region
      _
    $region45: #{vi_encoder_forward.1} parent=1 // pred_fallthru
      _
    // Predicated region
    $region46: #{vi_encoder_forward.1} parent=1 // pred_check
      _
    $region47: #{vi_encoder_forward.1} parent=1 // pred_check_branch
      %55 = sbr.rel (0) target = $region49
    $region48: #{vi_encoder_forward.1} parent=1 // pred_region
      _
    $region49: #{vi_encoder_forward.1} parent=1 // pred_fallthru
      _
    // Predicated region
    $region50: #{vi_encoder_forward.1} parent=1 // pred_check
      _
    $region51: #{vi_encoder_forward.1} parent=1 // pred_check_branch
      %57 = sbr.rel (0) target = $region53
    $region52: #{vi_encoder_forward.1} parent=1 // pred_region
      _
    $region53: #{vi_encoder_forward.1} parent=1 // pred_fallthru
      _
    // Predicated region
    $region54: #{vi_encoder_forward.1} parent=1 // pred_check
      _
    $region55: #{vi_encoder_forward.1} parent=1 // pred_check_branch
      %59 = sbr.rel (0) target = $region57
    $region56: #{vi_encoder_forward.1} parent=1 // pred_region
      %61 = dma.done [#allocation3], 4096
    $region57: #{vi_encoder_forward.1} parent=1 // pred_fallthru
      _
    %v62 = vld [vmem:[%s0] sm:$0xf]
    %v63 = vld [vmem:[%s2] sm:$0xff]
    %v64 = vld [vmem:[%s2 + $0x8] sm:$0xff]
    %v65 = vld [vmem:[%s2 + $0x10] sm:$0xff]
    %v66 = vld [vmem:[%s2 + $0x18] sm:$0xff]
    %v67 = vld [vmem:[%s2 + $0x20] sm:$0xff]
    %v68 = vld [vmem:[%s2 + $0x28] sm:$0xff]
    %v69 = vld [vmem:[%s2 + $0x30] sm:$0xff]
    %v70 = vld [vmem:[%s2 + $0x38] sm:$0xff]
    %v71 = vld [vmem:[%s3] sm:$0x1]
    %v73 = vperm.slane %v71, 0
    %vm75 = vcmask 523264
    %v77 = vsel %vm75, %v62, 0
    %79 = vmatpush.msra.mxu0 0.0
    %80 = vmatpush.msra.mxu0 0.0
    %81 = vmatpush.msra.mxu0 0.0
    %82 = vmatpush.msra.mxu0 0.0
    %83 = vmatpush.msra.mxu0 0.0
    %84 = vmatpush.msra.mxu0 0.0
    %85 = vmatpush.msra.mxu0 0.0
    %86 = vmatpush.msra.mxu0 0.0
    %87 = vmatpush.msra.mxu0 %v70
    %88 = vmatpush.msra.mxu0 %v69
    %89 = vmatpush.msra.mxu0 %v68
    %90 = vmatpush.msra.mxu0 %v67
    %91 = vmatpush.msra.mxu0 %v66
    %92 = vmatpush.msra.mxu0 %v65
    %93 = vmatpush.msra.mxu0 %v64
    %94 = vmatpush.msra.mxu0 %v63
    %95 = vmatmul.f32.gmra.mxu0 %v77
    %v96 = vpop.f32.mrf.mxu0
    %v97 = vadd.f32 %v73, %v96
    %98 = vdwg.mxu0
    %v99 = vmax.f32 %v97, 0.0
    %v100 = vld [vmem:[%s4] sm:$0xff]
    %v101 = vld [vmem:[%s4 + $0x8] sm:$0xff]
    %v102 = vld [vmem:[%s4 + $0x10] sm:$0xff]
    %v103 = vld [vmem:[%s4 + $0x18] sm:$0xff]
    %v104 = vld [vmem:[%s4 + $0x20] sm:$0xff]
    %v105 = vld [vmem:[%s4 + $0x28] sm:$0xff]
    %v106 = vld [vmem:[%s4 + $0x30] sm:$0xff]
    %v107 = vld [vmem:[%s4 + $0x38] sm:$0xff]
    %v108 = vld [vmem:[%s4 + $0x40] sm:$0xff]
    %v109 = vld [vmem:[%s4 + $0x48] sm:$0xff]
    %v110 = vld [vmem:[%s4 + $0x50] sm:$0xff]
    %v111 = vld [vmem:[%s4 + $0x58] sm:$0xff]
    %v112 = vld [vmem:[%s4 + $0x60] sm:$0xff]
    %v113 = vld [vmem:[%s4 + $0x68] sm:$0xff]
    %v114 = vld [vmem:[%s4 + $0x70] sm:$0xff]
    %v115 = vld [vmem:[%s4 + $0x78] sm:$0xff]
    %v116 = vld [vmem:[%s4 + $0x80] sm:$0xff]
    %v117 = vld [vmem:[%s4 + $0x88] sm:$0xff]
    %v118 = vld [vmem:[%s4 + $0x90] sm:$0xff]
    %v119 = vld [vmem:[%s4 + $0x98] sm:$0xff]
    %v120 = vld [vmem:[%s4 + $0xa0] sm:$0xff]
    %v121 = vld [vmem:[%s4 + $0xa8] sm:$0xff]
    %v122 = vld [vmem:[%s4 + $0xb0] sm:$0xff]
    %v123 = vld [vmem:[%s4 + $0xb8] sm:$0xff]
    %v124 = vld [vmem:[%s4 + $0xc0] sm:$0xff]
    %v125 = vld [vmem:[%s4 + $0xc8] sm:$0xff]
    %v126 = vld [vmem:[%s4 + $0xd0] sm:$0xff]
    %v127 = vld [vmem:[%s4 + $0xd8] sm:$0xff]
    %v128 = vld [vmem:[%s4 + $0xe0] sm:$0xff]
    %v129 = vld [vmem:[%s4 + $0xe8] sm:$0xff]
    %v130 = vld [vmem:[%s4 + $0xf0] sm:$0xff]
    %v131 = vld [vmem:[%s4 + $0xf8] sm:$0xff]
    %v132 = vld [vmem:[%s5] sm:$0x3]
    %v134 = vperm.slane %v132, 0
    %v135 = vperm.slane %v132, 1
    %138 = vmatpush.msra.mxu0 %v130
    %139 = vmatpush.msra.mxu0 %v128
    %140 = vmatpush.msra.mxu0 %v126
    %141 = vmatpush.msra.mxu0 %v124
    %142 = vmatpush.msra.mxu0 %v122
    %143 = vmatpush.msra.mxu0 %v120
    %144 = vmatpush.msra.mxu0 %v118
    %145 = vmatpush.msra.mxu0 %v116
    %146 = vmatpush.msra.mxu0 %v114
    %147 = vmatpush.msra.mxu0 %v112
    %148 = vmatpush.msra.mxu0 %v110
    %149 = vmatpush.msra.mxu0 %v108
    %150 = vmatpush.msra.mxu0 %v106
    %151 = vmatpush.msra.mxu0 %v104
    %152 = vmatpush.msra.mxu0 %v102
    %153 = vmatpush.msra.mxu0 %v100
    %154 = vmatmul.f32.gmra.mxu0 %v99
    %v155 = vpop.f32.mrf.mxu0
    %v156 = vadd.f32 %v134, %v155
    %157 = vdwg.mxu0
    %158 = vmatpush.msra.mxu0 %v131
    %159 = vmatpush.msra.mxu0 %v129
    %160 = vmatpush.msra.mxu0 %v127
    %161 = vmatpush.msra.mxu0 %v125
    %162 = vmatpush.msra.mxu0 %v123
    %163 = vmatpush.msra.mxu0 %v121
    %164 = vmatpush.msra.mxu0 %v119
    %165 = vmatpush.msra.mxu0 %v117
    %166 = vmatpush.msra.mxu0 %v115
    %167 = vmatpush.msra.mxu0 %v113
    %168 = vmatpush.msra.mxu0 %v111
    %169 = vmatpush.msra.mxu0 %v109
    %170 = vmatpush.msra.mxu0 %v107
    %171 = vmatpush.msra.mxu0 %v105
    %172 = vmatpush.msra.mxu0 %v103
    %173 = vmatpush.msra.mxu0 %v101
    %174 = vmatmul.f32.gmra.mxu0 %v99
    %v175 = vpop.f32.mrf.mxu0
    %v176 = vadd.f32 %v135, %v175
    %177 = vdwg.mxu0
    %v178 = vmax.f32 %v156, 0.0
    %v179 = vmax.f32 %v176, 0.0
    %v180 = vld [vmem:[#allocation2] sm:$0xff]
    %v181 = vld [vmem:[#allocation2 + $0x8] sm:$0xff]
    %v182 = vld [vmem:[#allocation2 + $0x10] sm:$0xff]
    %v183 = vld [vmem:[#allocation2 + $0x18] sm:$0xff]
    %v184 = vld [vmem:[#allocation2 + $0x20] sm:$0xff]
    %v185 = vld [vmem:[#allocation2 + $0x28] sm:$0xff]
    %v186 = vld [vmem:[#allocation2 + $0x30] sm:$0xff]
    %v187 = vld [vmem:[#allocation2 + $0x38] sm:$0xff]
    %v188 = vld [vmem:[#allocation2 + $0x40] sm:$0xff]
    %v189 = vld [vmem:[#allocation2 + $0x48] sm:$0xff]
    %v190 = vld [vmem:[#allocation2 + $0x50] sm:$0xff]
    %v191 = vld [vmem:[#allocation2 + $0x58] sm:$0xff]
    %v192 = vld [vmem:[#allocation2 + $0x60] sm:$0xff]
    %v193 = vld [vmem:[#allocation2 + $0x68] sm:$0xff]
    %v194 = vld [vmem:[#allocation2 + $0x70] sm:$0xff]
    %v195 = vld [vmem:[#allocation2 + $0x78] sm:$0xff]
    %v196 = vld [vmem:[#allocation2 + $0x80] sm:$0xff]
    %v197 = vld [vmem:[#allocation2 + $0x88] sm:$0xff]
    %v198 = vld [vmem:[#allocation2 + $0x90] sm:$0xff]
    %v199 = vld [vmem:[#allocation2 + $0x98] sm:$0xff]
    %v200 = vld [vmem:[#allocation2 + $0xa0] sm:$0xff]
    %v201 = vld [vmem:[#allocation2 + $0xa8] sm:$0xff]
    %v202 = vld [vmem:[#allocation2 + $0xb0] sm:$0xff]
    %v203 = vld [vmem:[#allocation2 + $0xb8] sm:$0xff]
    %v204 = vld [vmem:[#allocation2 + $0xc0] sm:$0xff]
    %v205 = vld [vmem:[#allocation2 + $0xc8] sm:$0xff]
    %v206 = vld [vmem:[#allocation2 + $0xd0] sm:$0xff]
    %v207 = vld [vmem:[#allocation2 + $0xd8] sm:$0xff]
    %v208 = vld [vmem:[#allocation2 + $0xe0] sm:$0xff]
    %v209 = vld [vmem:[#allocation2 + $0xe8] sm:$0xff]
    %v210 = vld [vmem:[#allocation2 + $0xf0] sm:$0xff]
    %v211 = vld [vmem:[#allocation2 + $0xf8] sm:$0xff]
    %v212 = vld [vmem:[%s7] sm:$0x1]
    %v214 = vperm.slane %v212, 0
    %216 = vmatpush.msra.mxu0 %v195
    %217 = vmatpush.msra.mxu0 %v194
    %218 = vmatpush.msra.mxu0 %v193
    %219 = vmatpush.msra.mxu0 %v192
    %220 = vmatpush.msra.mxu0 %v191
    %221 = vmatpush.msra.mxu0 %v190
    %222 = vmatpush.msra.mxu0 %v189
    %223 = vmatpush.msra.mxu0 %v188
    %224 = vmatpush.msra.mxu0 %v187
    %225 = vmatpush.msra.mxu0 %v186
    %226 = vmatpush.msra.mxu0 %v185
    %227 = vmatpush.msra.mxu0 %v184
    %228 = vmatpush.msra.mxu0 %v183
    %229 = vmatpush.msra.mxu0 %v182
    %230 = vmatpush.msra.mxu0 %v181
    %231 = vmatpush.msra.mxu0 %v180
    %232 = vmatmul.f32.gmra.mxu0 %v178
    %v233 = vpop.f32.mrf.mxu0
    %v234 = vadd.f32 %v214, %v233
    %235 = vdwg.mxu0
    %236 = vmatpush.msra.mxu0 %v211
    %237 = vmatpush.msra.mxu0 %v210
    %238 = vmatpush.msra.mxu0 %v209
    %239 = vmatpush.msra.mxu0 %v208
    %240 = vmatpush.msra.mxu0 %v207
    %241 = vmatpush.msra.mxu0 %v206
    %242 = vmatpush.msra.mxu0 %v205
    %243 = vmatpush.msra.mxu0 %v204
    %244 = vmatpush.msra.mxu0 %v203
    %245 = vmatpush.msra.mxu0 %v202
    %246 = vmatpush.msra.mxu0 %v201
    %247 = vmatpush.msra.mxu0 %v200
    %248 = vmatpush.msra.mxu0 %v199
    %249 = vmatpush.msra.mxu0 %v198
    %250 = vmatpush.msra.mxu0 %v197
    %251 = vmatpush.msra.mxu0 %v196
    %252 = vmatmul.f32.gmra.mxu0 %v179
    %v253 = vpop.f32.mrf.mxu0
    %v254 = vadd.f32 %v234, %v253
    %255 = vdwg.mxu0
    %v256 = vmax.f32 %v254, 0.0
    %v257 = vld [vmem:[%s8] sm:$0xff]
    %v258 = vld [vmem:[%s8 + $0x8] sm:$0xff]
    %v259 = vld [vmem:[%s8 + $0x10] sm:$0xff]
    %v260 = vld [vmem:[%s8 + $0x18] sm:$0xff]
    %v261 = vld [vmem:[%s8 + $0x20] sm:$0xff]
    %v262 = vld [vmem:[%s8 + $0x28] sm:$0xff]
    %v263 = vld [vmem:[%s8 + $0x30] sm:$0xff]
    %v264 = vld [vmem:[%s8 + $0x38] sm:$0xff]
    %v265 = vld [vmem:[%s8 + $0x40] sm:$0xff]
    %v266 = vld [vmem:[%s8 + $0x48] sm:$0xff]
    %v267 = vld [vmem:[%s8 + $0x50] sm:$0xff]
    %v268 = vld [vmem:[%s8 + $0x58] sm:$0xff]
    %v269 = vld [vmem:[%s8 + $0x60] sm:$0xff]
    %v270 = vld [vmem:[%s8 + $0x68] sm:$0xff]
    %v271 = vld [vmem:[%s8 + $0x70] sm:$0xff]
    %v272 = vld [vmem:[%s8 + $0x78] sm:$0xff]
    %v273 = vld [vmem:[%s9] sm:$0x1]
    %v275 = vperm.slane %v273, 0
    %277 = vmatpush.msra.mxu0 %v272
    %278 = vmatpush.msra.mxu0 %v271
    %279 = vmatpush.msra.mxu0 %v270
    %280 = vmatpush.msra.mxu0 %v269
    %281 = vmatpush.msra.mxu0 %v268
    %282 = vmatpush.msra.mxu0 %v267
    %283 = vmatpush.msra.mxu0 %v266
    %284 = vmatpush.msra.mxu0 %v265
    %285 = vmatpush.msra.mxu0 %v264
    %286 = vmatpush.msra.mxu0 %v263
    %287 = vmatpush.msra.mxu0 %v262
    %288 = vmatpush.msra.mxu0 %v261
    %289 = vmatpush.msra.mxu0 %v260
    %290 = vmatpush.msra.mxu0 %v259
    %291 = vmatpush.msra.mxu0 %v258
    %292 = vmatpush.msra.mxu0 %v257
    %293 = vmatmul.f32.gmra.mxu0 %v256
    %v294 = vpop.f32.mrf.mxu0
    %v295 = vadd.f32 %v275, %v294
    %296 = vdwg.mxu0
    %v297 = vld [vmem:[%s10] sm:$0xff]
    %v298 = vld [vmem:[%s10 + $0x8] sm:$0xff]
    %v299 = vld [vmem:[%s10 + $0x10] sm:$0xff]
    %v300 = vld [vmem:[%s10 + $0x18] sm:$0xff]
    %v301 = vld [vmem:[%s10 + $0x20] sm:$0xff]
    %v302 = vld [vmem:[%s10 + $0x28] sm:$0xff]
    %v303 = vld [vmem:[%s10 + $0x30] sm:$0xff]
    %v304 = vld [vmem:[%s10 + $0x38] sm:$0xff]
    %v305 = vld [vmem:[%s11] sm:$0x1]
    %v307 = vperm.slane %v305, 0
    %v310 = vsel %vm75, %v295, 0
    %312 = vmatpush.msra.mxu0 0.0
    %313 = vmatpush.msra.mxu0 0.0
    %314 = vmatpush.msra.mxu0 0.0
    %315 = vmatpush.msra.mxu0 0.0
    %316 = vmatpush.msra.mxu0 0.0
    %317 = vmatpush.msra.mxu0 0.0
    %318 = vmatpush.msra.mxu0 0.0
    %319 = vmatpush.msra.mxu0 0.0
    %320 = vmatpush.msra.mxu0 %v304
    %321 = vmatpush.msra.mxu0 %v303
    %322 = vmatpush.msra.mxu0 %v302
    %323 = vmatpush.msra.mxu0 %v301
    %324 = vmatpush.msra.mxu0 %v300
    %325 = vmatpush.msra.mxu0 %v299
    %326 = vmatpush.msra.mxu0 %v298
    %327 = vmatpush.msra.mxu0 %v297
    %328 = vmatmul.f32.gmra.mxu0 %v310
    %v329 = vpop.f32.mrf.mxu0
    %v330 = vadd.f32 %v307, %v329
    %331 = vdwg.mxu0
    %v333 = vrot.slane %v330, 4
    %vm335 = vcmask 1043456
    %v336 = vsel %vm335, %v330, %v333
    %v337 = vld [vmem:[%s1] sm:$0xff]
    %v338 = vld [vmem:[%s1 + $0x8] sm:$0xff]
    %v339 = vmul.f32 %v336, 0.5
    %v340 = vmul.f32 %v339, 1.442695
    %v341 = vpow.pop %v340
    %v342 = vmul.f32 %v337, %v341
    %v343 = vmul.f32 %v338, %v341
    %346 = vrot.lane.b32.xlu0 %v342, 32
    %v347 = vpop.permute.xlu0 %346
    %348 = vrot.lane.b32.xlu0 %v343, 32
    %v349 = vpop.permute.xlu0 %348
    %v352 = vadd.f32 %v336, %v347
    %v353 = vadd.f32 %v336, %v349
    %356 = vrot.lane.b32.xlu0 %v352, 96
    %v357 = vpop.permute.xlu0 %356
    %358 = vrot.lane.b32.xlu0 %v353, 96
    %v359 = vpop.permute.xlu0 %358
    %vm362 = vcmask 261120
    %363 = vst.msk [vmem:[%s13] sm:$0xff] %vm362, %v357
    %364 = vst.msk [vmem:[%s13 + $0x8] sm:$0xff] %vm362, %v359
    %v365 = vld [vmem:[%s12] sm:$0xff]
    %v366 = vld [vmem:[%s12 + $0x8] sm:$0xff]
    %v367 = vld [vmem:[%s12 + $0x10] sm:$0xff]
    %v368 = vld [vmem:[%s12 + $0x18] sm:$0xff]
    %v369 = vsel %vm362, %v357, 0
    %v371 = vsel %vm362, %v359, 0
    %373 = vmatpush.msra.mxu0 0.0
    %374 = vmatpush.msra.mxu0 0.0
    %375 = vmatpush.msra.mxu0 0.0
    %376 = vmatpush.msra.mxu0 0.0
    %377 = vmatpush.msra.mxu0 0.0
    %378 = vmatpush.msra.mxu0 0.0
    %379 = vmatpush.msra.mxu0 0.0
    %380 = vmatpush.msra.mxu0 0.0
    %381 = vmatpush.msra.mxu0 0.0
    %382 = vmatpush.msra.mxu0 0.0
    %383 = vmatpush.msra.mxu0 0.0
    %384 = vmatpush.msra.mxu0 0.0
    %385 = vmatpush.msra.mxu0 %v368
    %386 = vmatpush.msra.mxu0 %v367
    %387 = vmatpush.msra.mxu0 %v366
    %388 = vmatpush.msra.mxu0 %v365
    %389 = vmatmul.f32.gmra.mxu0 %v369
    %v390 = vpop.f32.mrf.mxu0
    %v391 = vadd.f32 0.0, %v390
    %392 = vmatmul.f32.gmra.mxu0 %v371
    %v393 = vpop.f32.mrf.mxu0
    %v394 = vadd.f32 0.0, %v393
    %395 = vdwg.mxu0
    %v396 = vrot.slane %v62, 4
    %v398 = vsel %vm335, %v62, %v396
    %v399 = vsub.f32 %v391, %v398
    %v400 = vsub.f32 %v394, %v398
    %v401 = vmul.f32 %v399, %v399
    %v402 = vmul.f32 %v400, %v400
    %v403 = vsel %vm75, %v401, 0.0
    %404 = vadd.xlane.f32.xlu0 %v403
    %v405 = vpop.xlane.xlu0 %404
    %v406 = vsel %vm75, %v402, 0.0
    %407 = vadd.xlane.f32.xlu0 %v406
    %v408 = vpop.xlane.xlu0 %407
    %v409 = vmul.f32 %v405, 0.5
    %v410 = vmul.f32 %v408, 0.5
    %v411 = vmul.f32 %v352, %v352
    %v412 = vmul.f32 %v353, %v353
    %v413 = vmul.f32 %v337, %v337
    %v414 = vmul.f32 %v338, %v338
    %417 = vrot.lane.b32.xlu0 %v413, 32
    %v418 = vpop.permute.xlu0 %417
    %419 = vrot.lane.b32.xlu0 %v414, 32
    %v420 = vpop.permute.xlu0 %419
    %v423 = vsub.f32 %v411, %v418
    %v424 = vsub.f32 %v412, %v420
    %426 = vrot.lane.b32.xlu0 %v336, 32
    %v427 = vpop.permute.xlu0 %426
    %v429 = vsub.f32 %v423, %v427
    %v430 = vsub.f32 %v424, %v427
    %433 = vrot.lane.b32.xlu0 %v429, 96
    %v434 = vpop.permute.xlu0 %433
    %435 = vrot.lane.b32.xlu0 %v430, 96
    %v436 = vpop.permute.xlu0 %435
    %v439 = vsel %vm362, %v434, 0.0
    %440 = vadd.xlane.f32.xlu0 %v439
    %v441 = vpop.xlane.xlu0 %440
    %v442 = vsel %vm362, %v436, 0.0
    %443 = vadd.xlane.f32.xlu0 %v442
    %v444 = vpop.xlane.xlu0 %443
    %v445 = vmul.f32 %v441, 0.5
    %v446 = vmul.f32 %v444, 0.5
    %vm447 = vcmask 7168
    %v448 = vsel %vm447, %v409, %v445
    %v449 = vsel %vm447, %v410, %v446
    %vm450 = vcmask 15360
    %451 = vst.msk [vmem:[%s14] sm:$0xff] %vm450, %v448
    %452 = vst.msk [vmem:[%s14 + $0x8] sm:$0xff] %vm450, %v449
    // Predicated region
    $region58: #{vi_encoder_forward.1} parent=1 // pred_check
      _
    $region59: #{vi_encoder_forward.1} parent=1 // pred_check_branch
      %454 = sbr.rel (0) target = $region61
    $region60: #{vi_encoder_forward.1} parent=1 // pred_region
      _
    $region61: #{vi_encoder_forward.1} parent=1 // pred_fallthru
      _
    // Predicated region
    $region62: #{vi_encoder_forward.1} parent=1 // pred_check
      _
    $region63: #{vi_encoder_forward.1} parent=1 // pred_check_branch
      %456 = sbr.rel (0) target = $region65
    $region64: #{vi_encoder_forward.1} parent=1 // pred_region
      _
    $region65: #{vi_encoder_forward.1} parent=1 // pred_fallthru
      _
    // Predicated region
    $region66: #{vi_encoder_forward.1} parent=1 // pred_check
      _
    $region67: #{vi_encoder_forward.1} parent=1 // pred_check_branch
      %458 = sbr.rel (0) target = $region69
    $region68: #{vi_encoder_forward.1} parent=1 // pred_region
      _
    $region69: #{vi_encoder_forward.1} parent=1 // pred_fallthru
      _
    // Predicated region
    $region70: #{vi_encoder_forward.1} parent=1 // pred_check
      _
    $region71: #{vi_encoder_forward.1} parent=1 // pred_check_branch
      %460 = sbr.rel (0) target = $region73
    $region72: #{vi_encoder_forward.1} parent=1 // pred_region
      _
    $region73: #{vi_encoder_forward.1} parent=1 // pred_fallthru
      _
    %461 = vsyncpa [#allocation3], 1

</llo_original>
